<compile_context>
chip_gen: v5e
topology: v5e:2x2
jax: 0.10.0
libtpu: 0.0.40
codegen_flags: <defaults>
</compile_context>

<pallas_src>
import math
import functools

import jax
import jax.numpy as jnp
from jax import lax
from jax.experimental import pallas as pl
from jax.experimental.pallas import tpu as pltpu


# ---------------------------------------------------------------------------
# PE table construction (deterministic "buffer" init, same math as PyTorch)
# ---------------------------------------------------------------------------
def make_positional_encoding_table(max_len: int, d_model: int,
                                   dtype=jnp.float32) -> jnp.ndarray:
    position = jnp.arange(max_len, dtype=jnp.float32)[:, None]            # [L, 1]
    div_term = jnp.exp(
        jnp.arange(0, d_model, 2, dtype=jnp.float32)
        * (-math.log(10000.0) / d_model))                                  # [D/2]
    pe = jnp.zeros((max_len, d_model), dtype=jnp.float32)
    pe = pe.at[:, 0::2].set(jnp.sin(position * div_term))
    pe = pe.at[:, 1::2].set(jnp.cos(position * div_term))
    return pe.astype(dtype)                                                # [L, D]


# ---------------------------------------------------------------------------
# Kernels
# ---------------------------------------------------------------------------
def _pe_add_kernel(x_ref, pe_ref, o_ref):
    # x_ref: [tS, B, D]; pe_ref: [tS, D] (x.dtype) -> o_ref: [tS, B, D]
    o_ref[...] = x_ref[...] + pe_ref[...][:, None, :]


def _splitmix32(x):
    # Standard 32-bit finalizer; all plain uint32 VPU ops.
    x = (x ^ (x >> 16)) * jnp.uint32(0x7FEB352D)
    x = (x ^ (x >> 15)) * jnp.uint32(0x846CA68B)
    return x ^ (x >> 16)


def _pe_add_dropout_kernel(seed_ref, x_ref, pe_ref, o_ref, *, threshold, scale):
    # Training-mode path: add PE, then inverted dropout with keep prob 1-p.
    tS, B, D = x_ref.shape
    y = x_ref[...] + pe_ref[...][:, None, :]                  # native dtype add

    # Counter-based PRNG: hash(seed, global flat element index).  Mask is
    # independent of the tiling and uncorrelated across tiles.
    row0 = (pl.program_id(0) * tS).astype(jnp.uint32)
    s = lax.broadcasted_iota(jnp.int32, (tS, B, D), 0).astype(jnp.uint32) + row0
    b = lax.broadcasted_iota(jnp.int32, (tS, B, D), 1).astype(jnp.uint32)
    d = lax.broadcasted_iota(jnp.int32, (tS, B, D), 2).astype(jnp.uint32)
    idx = (s * jnp.uint32(B) + b) * jnp.uint32(D) + d
    seed_u = seed_ref[0].astype(jnp.uint32)
    bits = _splitmix32(idx ^ (seed_u * jnp.uint32(0x9E3779B9)))
    keep = bits >= jnp.uint32(threshold)                      # P(keep) = 1 - p

    # `scale` is a python float -> weak-typed, stays in y.dtype.
    o_ref[...] = jnp.where(keep, y * scale, 0.0).astype(o_ref.dtype)


# ---------------------------------------------------------------------------
# Tiling / VMEM budgeting
# ---------------------------------------------------------------------------
_MIN_SUBLANE = {4: 8, 2: 16, 1: 32}    # itemsize -> minimum sublane multiple


def _round_up(x, m):
    return -(-x // m) * m


def _vmem_limit_bytes():
    # v5e/v6e: 128 MiB physical VMEM -> 96 MiB scoped limit is safe.
    # v7x: 64 MiB physical -> cap near 48 MiB.
    # Fall back conservatively if the hardware query is unavailable
    # (e.g. interpret mode on CPU).
    try:
        cap = int(pltpu.get_tpu_info().vmem_capacity_bytes)
    except Exception:
        cap = 64 * 1024 * 1024
    return min(96 * 1024 * 1024, (cap * 3) // 4)


def _auto_tile_s(S, B, D, dtype, *, training, vmem_limit,
                 target_hbm_bytes=8 * 1024 * 1024):
    """Pick the sequence-tile length tS for [tS, B, D] x/out blocks."""
    itemsize = jnp.dtype(dtype).itemsize
    sub = _MIN_SUBLANE.get(itemsize, 8)

    # ~8 MiB of raw x bytes per tile amortizes the fixed per-grid-step cost
    # down to a few % for this HBM-bound op.
    tS = max(1, target_hbm_bytes // max(1, B * D * itemsize))

    # Padded VMEM footprint per sequence row: double-buffered x + out tiles,
    # double-buffered pe tile, plus the u32 random-bits temporary (training).
    Bp = _round_up(B, sub)
    Dp = _round_up(D, 128)
    row = 4 * Bp * Dp * itemsize + 2 * Dp * itemsize
    if training:
        row += Bp * Dp * 4
    budget = int(vmem_limit * 0.8)                 # headroom for compiler scratch
    tS = min(tS, max(1, budget // row))

    # Keep >= 2 grid steps when possible so the "parallel" axis can be
    # sharded over v7x's two TensorCores.
    if S >= 2 * sub:
        tS = min(tS, max(sub, (((S + 1) // 2) // sub) * sub))

    if tS >= S:
        return S
    return max(sub, (int(tS) // sub) * sub)        # dtype-aware sublane rounding


# ---------------------------------------------------------------------------
# Wrapper
# ---------------------------------------------------------------------------
def positional_encoding(x, pe_table, *, dropout_p=0.1, training=False,
                        seed=0, tile_s=None):
    """x: [S, B, D]; pe_table: [max_len, D] (ideally pre-cast to x.dtype).

    Returns [S, B, D].  Callers should donate x at the jit boundary
    (jax.jit(..., donate_argnums=...)) so input_output_aliases avoids a copy.
    """
    S, B, D = x.shape
    assert pe_table.shape[0] >= S and pe_table.shape[1] == D
    if pe_table.dtype != x.dtype:
        pe_table = pe_table.astype(x.dtype)        # fallback; pre-cast at init

    training = bool(training) and float(dropout_p) > 0.0
    vmem_limit = _vmem_limit_bytes()
    sub = _MIN_SUBLANE.get(jnp.dtype(x.dtype).itemsize, 8)

    if tile_s is None:
        tS = _auto_tile_s(S, B, D, x.dtype, training=training,
                          vmem_limit=vmem_limit)
    elif int(tile_s) >= S:
        tS = S                                     # full dim is always legal
    else:
        tS = max(sub, (int(tile_s) // sub) * sub)
    grid = (pl.cdiv(S, tS),)

    x_spec = pl.BlockSpec((tS, B, D), lambda i: (i, 0, 0))
    pe_spec = pl.BlockSpec((tS, D), lambda i: (i, 0))      # indexes the full table
    out_spec = pl.BlockSpec((tS, B, D), lambda i: (i, 0, 0))
    out_shape = jax.ShapeDtypeStruct((S, B, D), x.dtype)

    cparams = pltpu.CompilerParams(
        dimension_semantics=("parallel",),          # v7x: shard tiles over 2 TCs
        vmem_limit_bytes=int(vmem_limit),
    )

    if not training:
        # nn.Dropout is identity in eval mode (or p == 0).
        return pl.pallas_call(
            _pe_add_kernel,
            grid=grid,
            in_specs=[x_spec, pe_spec],
            out_specs=out_spec,
            out_shape=out_shape,
            input_output_aliases={0: 0},            # donate x into the output
            compiler_params=cparams,
        )(x, pe_table)

    p = float(dropout_p)
    threshold = min(int(round(p * (1 << 32))), (1 << 32) - 1)
    scale = 1.0 / (1.0 - p)
    seed_arr = jnp.asarray([seed], dtype=jnp.int32)
    kernel = functools.partial(_pe_add_dropout_kernel,
                               threshold=threshold, scale=scale)
    return pl.pallas_call(
        kernel,
        grid=grid,
        in_specs=[pl.BlockSpec(memory_space=pltpu.MemorySpace.SMEM),
                  x_spec, pe_spec],
        out_specs=out_spec,
        out_shape=out_shape,
        input_output_aliases={1: 0},                # donate x into the output
        compiler_params=cparams,
    )(seed_arr, x, pe_table)


# ---------------------------------------------------------------------------
# Demo / self-test
# ---------------------------------------------------------------------------
if __name__ == "__main__":
    d_model = 32
    max_len = 64
    batch = 2

    # "Module init": build (and, in real use, pre-cast) the PE buffer once.
    pe_table = make_positional_encoding_table(max_len, d_model)

    # --- eval mode (dropout = identity), single-tile grid ---
    S = 8
    x = jax.random.normal(jax.random.PRNGKey(0), (S, batch, d_model),
                          dtype=jnp.float32)
    out = jax.block_until_ready(positional_encoding(x, pe_table, training=False))
    ref = x + pe_table[:S][:, None, :]
    assert out.shape == x.shape and out.dtype == x.dtype
    assert jnp.allclose(out, ref, atol=1e-6, rtol=1e-6)

    # --- eval mode, explicit multi-tile grid with a partial last block ---
    S2 = 40
    x2 = jax.random.normal(jax.random.PRNGKey(1), (S2, batch, d_model),
                           dtype=jnp.float32)
    out2 = jax.block_until_ready(
        positional_encoding(x2, pe_table, training=False, tile_s=16))
    ref2 = x2 + pe_table[:S2][:, None, :]
    assert jnp.allclose(out2, ref2, atol=1e-6, rtol=1e-6)

    # --- eval mode, auto tiling (exercises the VMEM-budgeted tile chooser) ---
    out2b = jax.block_until_ready(positional_encoding(x2, pe_table, training=False))
    assert jnp.allclose(out2b, ref2, atol=1e-6, rtol=1e-6)

    # --- training mode (PE add + inverted dropout), tiled ---
    p = 0.1
    out_tr = jax.block_until_ready(
        positional_encoding(x2, pe_table, dropout_p=p, training=True,
                            seed=123, tile_s=16))
    scaled = ref2 / (1.0 - p)
    is_dropped = jnp.isclose(out_tr, 0.0, atol=1e-6)
    is_kept = jnp.isclose(out_tr, scaled, atol=1e-5, rtol=1e-5)
    assert out_tr.shape == x2.shape and out_tr.dtype == x2.dtype
    assert bool(jnp.all(is_dropped | is_kept))
    keep_frac = float(jnp.mean(is_kept.astype(jnp.float32)))
    assert 0.4 < keep_frac <= 1.0   # expected ~0.9 with p = 0.1

    print("KERNEL_OK")
</pallas_src>

<mosaic_0001>
module attributes {stable_mosaic.version = 11 : i64} {
  func.func @_pe_add_kernel(%arg0: i32, %arg1: memref<8x2x32xf32, #tpu.memory_space<vmem>>, %arg2: memref<8x32xf32, #tpu.memory_space<vmem>>, %arg3: memref<8x2x32xf32, #tpu.memory_space<vmem>>) attributes {dimension_semantics = [#tpu.dimension_semantics<parallel>], iteration_bounds = array<i64: 1>, scalar_prefetch = 0 : i64, scratch_operands = 0 : i64, tpu.core_type = #tpu.core_type<tc>, window_params = [{transform_indices = @transform_0, window_bounds = array<i64: 8, 2, 32>}, {transform_indices = @transform_1, window_bounds = array<i64: 8, 32>}, {transform_indices = @transform_2, window_bounds = array<i64: 8, 2, 32>}]} {
    %c0 = arith.constant 0 : index
    %c0_0 = arith.constant 0 : index
    %c0_1 = arith.constant 0 : index
    %0 = vector.load %arg1[%c0, %c0_0, %c0_1] : memref<8x2x32xf32, #tpu.memory_space<vmem>>, vector<8x2x32xf32>
    %c0_2 = arith.constant 0 : index
    %c0_3 = arith.constant 0 : index
    %1 = vector.load %arg2[%c0_2, %c0_3] : memref<8x32xf32, #tpu.memory_space<vmem>>, vector<8x32xf32>
    %2 = vector.shape_cast %1 : vector<8x32xf32> to vector<8x1x32xf32>
    %3 = vector.broadcast %2 : vector<8x1x32xf32> to vector<8x2x32xf32>
    %4 = arith.addf %0, %3 : vector<8x2x32xf32>
    %c0_4 = arith.constant 0 : index
    %c0_5 = arith.constant 0 : index
    %c0_6 = arith.constant 0 : index
    %5 = vector.load %arg3[%c0_4, %c0_5, %c0_6] : memref<8x2x32xf32, #tpu.memory_space<vmem>>, vector<8x2x32xf32>
    tpu.vector_store %arg3[%c0_4, %c0_5, %c0_6], %4 {strides = array<i32>} : memref<8x2x32xf32, #tpu.memory_space<vmem>>, vector<8x2x32xf32>,
    return
  }
  func.func @transform_0(%arg0: i32) -> (i32, i32, i32) {
    %c0_i32 = arith.constant 0 : i32
    %c0_i32_0 = arith.constant 0 : i32
    %c0_i32_1 = arith.constant 0 : i32
    return %arg0, %c0_i32, %c0_i32_0 : i32, i32, i32
  }
  func.func @transform_1(%arg0: i32) -> (i32, i32) {
    %c0_i32 = arith.constant 0 : i32
    %c0_i32_0 = arith.constant 0 : i32
    return %arg0, %c0_i32 : i32, i32
  }
  func.func @transform_2(%arg0: i32) -> (i32, i32, i32) {
    %c0_i32 = arith.constant 0 : i32
    %c0_i32_0 = arith.constant 0 : i32
    %c0_i32_1 = arith.constant 0 : i32
    return %arg0, %c0_i32, %c0_i32_0 : i32, i32, i32
  }
}

</mosaic_0001>

<llo_original>
// kernel: tpu_custom_call.1
$region0: #{tpu_custom_call.1}
  #allocation0 [shape = 'u32[]', space=smem, size = 0x4, offset = 0x4, fixed_abs, tag = 'smem constant byte address 0x4 - core index']
  #allocation1 [shape = 'u32[72,128]{1,0:T(1,128)}', space=vmem, size = 0x9000, scoped, tag = 'internal scratch']
  %s0 = inlined_call_operand.hbm [shape: f32[8,2,32], index: 0, kind: input, shape index: {}, may-alias: {0,2}]
  %s1 = inlined_call_operand.vmem [shape: f32[64,32], index: 1, kind: input, shape index: {}]
  %s2 = inlined_call_operand.hbm [shape: f32[8,2,32], index: 2, kind: output, shape index: {}, may-alias: {0,2}]
  %s3 = sld [smem:[#allocation0]]
  $region22: #{tpu_custom_call.1} parent=0
    _
  %s5 = ssub.s32 1, %s3
  %s6 = scalar_select 0, %s5, %s3
  $region1: #{tpu_custom_call.1} parent=0
    #allocation2 [shape = 'u8[8192]{0}', space=vmem, size = 0x2000, scoped, tag = 'input window, operand 0, single buffered']
    #allocation3 [shape = 's32[1]{0}', space=sflag, size = 0x4, scoped, tag = 'scoped memory for tpu_custom_call.1']
    #allocation4 [shape = 's32[1]{0}', space=sflag, size = 0x4, scoped, tag = 'scoped memory for tpu_custom_call.1']
    #allocation5 [shape = 'u8[8192]{0}', space=vmem, size = 0x2000, scoped, tag = 'output window, operand 0, single buffered']
    %7 = vsyncpa [#allocation3], 0
    %8 = vsyncpa [#allocation4], 0
    // Predicated region
    $region2: #{tpu_custom_call.1} parent=1 // pred_check
      _
    $region3: #{tpu_custom_call.1} parent=1 // pred_check_branch
      %10 = sbr.rel (0) target = $region5
    $region4: #{tpu_custom_call.1} parent=1 // pred_region
      %12 = vsyncadd [#allocation3], 0
      %s13 = sshll.u32 %s0, 4
      %s14 = int_to_ptr.hbm [resolvable:$true] %s13
      %s15 = sshll.u32 [#allocation2], 4
      %s16 = int_to_ptr.vmem [resolvable:$true] %s15
      %21 = dma.hbm_to_vmem [thread:$0]  %s14, 256, %s16, [#allocation3], 32, 32, 2
    $region5: #{tpu_custom_call.1} parent=1 // pred_fallthru
      _
    // Predicated region
    $region6: #{tpu_custom_call.1} parent=1 // pred_check
      _
    $region7: #{tpu_custom_call.1} parent=1 // pred_check_branch
      %23 = sbr.rel (0) target = $region9
    $region8: #{tpu_custom_call.1} parent=1 // pred_region
      _
    $region9: #{tpu_custom_call.1} parent=1 // pred_fallthru
      _
    // Predicated region
    $region10: #{tpu_custom_call.1} parent=1 // pred_check
      _
    $region11: #{tpu_custom_call.1} parent=1 // pred_check_branch
      %25 = sbr.rel (0) target = $region13
    $region12: #{tpu_custom_call.1} parent=1 // pred_region
      %27 = dma.done [#allocation3], 256
    $region13: #{tpu_custom_call.1} parent=1 // pred_fallthru
      _
    %v28 = vld [vmem:[#allocation2] sm:$0x3]
    %v29 = vld [vmem:[#allocation2 + $0x2] sm:$0x3]
    %v30 = vld [vmem:[#allocation2 + $0x4] sm:$0x3]
    %v31 = vld [vmem:[#allocation2 + $0x6] sm:$0x3]
    %v32 = vld [vmem:[#allocation2 + $0x8] sm:$0x3]
    %v33 = vld [vmem:[#allocation2 + $0xa] sm:$0x3]
    %v34 = vld [vmem:[#allocation2 + $0xc] sm:$0x3]
    %v35 = vld [vmem:[#allocation2 + $0xe] sm:$0x3]
    %v36 = vld [vmem:[%s1] sm:$0xff]
    %v38 = vrot.slane %v36, 1
    %v39 = vrot.slane %v36, 2
    %v40 = vrot.slane %v36, 3
    %v41 = vrot.slane %v36, 4
    %v42 = vrot.slane %v36, 5
    %v43 = vrot.slane %v36, 6
    %v44 = vrot.slane %v36, 7
    %v45 = vperm.slane %v36, 0
    %v46 = vperm.slane %v38, 0
    %v47 = vperm.slane %v39, 0
    %v48 = vperm.slane %v40, 0
    %v49 = vperm.slane %v41, 0
    %v50 = vperm.slane %v42, 0
    %v51 = vperm.slane %v43, 0
    %v52 = vperm.slane %v44, 0
    %v61 = vadd.f32 %v28, %v45
    %v62 = vadd.f32 %v29, %v46
    %v63 = vadd.f32 %v30, %v47
    %v64 = vadd.f32 %v31, %v48
    %v65 = vadd.f32 %v32, %v49
    %v66 = vadd.f32 %v33, %v50
    %v67 = vadd.f32 %v34, %v51
    %v68 = vadd.f32 %v35, %v52
    %vm69 = vcmask 254976
    %70 = vst.msk [vmem:[#allocation5] sm:$0x3] %vm69, %v61
    %71 = vst.msk [vmem:[#allocation5 + $0x2] sm:$0x3] %vm69, %v62
    %72 = vst.msk [vmem:[#allocation5 + $0x4] sm:$0x3] %vm69, %v63
    %73 = vst.msk [vmem:[#allocation5 + $0x6] sm:$0x3] %vm69, %v64
    %74 = vst.msk [vmem:[#allocation5 + $0x8] sm:$0x3] %vm69, %v65
    %75 = vst.msk [vmem:[#allocation5 + $0xa] sm:$0x3] %vm69, %v66
    %76 = vst.msk [vmem:[#allocation5 + $0xc] sm:$0x3] %vm69, %v67
    %77 = vst.msk [vmem:[#allocation5 + $0xe] sm:$0x3] %vm69, %v68
    // Predicated region
    $region14: #{tpu_custom_call.1} parent=1 // pred_check
      _
    $region15: #{tpu_custom_call.1} parent=1 // pred_check_branch
      %79 = sbr.rel (0) target = $region17
    $region16: #{tpu_custom_call.1} parent=1 // pred_region
      %81 = vsyncadd [#allocation4], 0
      %s82 = sshll.u32 [#allocation5], 4
      %s83 = int_to_ptr.vmem [resolvable:$true] %s82
      %s84 = sshll.u32 %s2, 4
      %s85 = int_to_ptr.hbm [resolvable:$true] %s84
      %90 = dma.vmem_to_hbm [thread:$0]  %s83, 256, %s85, [#allocation4], 32, 32, 2
    $region17: #{tpu_custom_call.1} parent=1 // pred_fallthru
      _
    // Predicated region
    $region18: #{tpu_custom_call.1} parent=1 // pred_check
      _
    $region19: #{tpu_custom_call.1} parent=1 // pred_check_branch
      %92 = sbr.rel (0) target = $region21
    $region20: #{tpu_custom_call.1} parent=1 // pred_region
      %94 = dma.done [#allocation4], 256
    $region21: #{tpu_custom_call.1} parent=1 // pred_fallthru
      _
    %95 = vsyncpa [#allocation3], 1
    %96 = vsyncpa [#allocation4], 1

</llo_original>
